<compile_context>
chip_gen: v7x
topology: tpu7x:2x2x1
jax: 0.10.0
libtpu: 0.0.40
codegen_flags: <defaults>
</compile_context>

<pallas_src>
import jax
import jax.numpy as jnp
from jax import lax
from jax.experimental import pallas as pl
from jax.experimental.pallas import tpu as pltpu

EPS = 1e-5


def resolve_stride_padding(in_channel, expand_channel, stride=None, padding=None,
                           remain_dim=False):
    if stride is None:
        stride = 1
        if in_channel != expand_channel and not remain_dim:
            stride = 2
    if padding is None:
        padding = 1
    return stride, padding


def _im2col_s2(img, Ho, Wo, stride, padding):
    """(B, C, H, W) -> (9*C, B*Ho*Wo) stride-2 3x3 im2col, zeros at conv padding.

    Row index = (kh*3 + kw)*C + c ; column index = b*Ho*Wo + oh*Wo + ow.
    """
    B, C, H, W = img.shape
    p = jnp.pad(img, ((0, 0), (0, 0), (padding, padding), (padding, padding)))
    taps = [p[:, :, kh:kh + stride * (Ho - 1) + 1:stride,
               kw:kw + stride * (Wo - 1) + 1:stride]
            for kh in range(3) for kw in range(3)]              # each (B, C, Ho, Wo)
    t = jnp.stack(taps, 0)                                      # (9, B, C, Ho, Wo)
    return jnp.transpose(t, (0, 2, 1, 3, 4)).reshape(9 * C, B * Ho * Wo)


def _make_block_kernel(Cin, Cb, Cexp, n_stat, n_out, r_w2, r_w3, r_mask, c_bn3, c_bn12):
    """Fused bottleneck-block kernel: single invocation, everything resident in VMEM."""
    inv_stat = 1.0 / float(n_stat)
    inv_out = 1.0 / float(n_out)

    def bn_affine(y, g, be, inv_n):
        # One-pass batch-norm scale/shift: y_bn = sc*y + sh  (variance clamped >= 0).
        s = jnp.sum(y, axis=1, keepdims=True)
        q = jnp.sum(y * y, axis=1, keepdims=True)
        m = s * inv_n
        v = jnp.maximum(q * inv_n - m * m, 0.0)
        sc = g * lax.rsqrt(v + EPS)
        return sc, be - m * sc

    def kernel(xim_ref, xcm_ref, pp_ref, o_ref):
        # ---- BN1 batch statistics over all B*H*W real pixels (channel-major, lane-dense) ---
        w1t = pp_ref[0:Cb, 0:Cin]                                          # (Cb, Cin)
        y1f = jnp.dot(w1t, xcm_ref[...], preferred_element_type=jnp.float32)  # (Cb, n_stat)
        sc1, sh1 = bn_affine(y1f,
                             pp_ref[r_w3:r_w3 + Cb, c_bn12 + 0:c_bn12 + 1],
                             pp_ref[r_w3:r_w3 + Cb, c_bn12 + 1:c_bn12 + 2], inv_stat)

        # ---- stage 1 applied in tap space: ONE block-diagonal matmul, K = 9*Cin -----------
        y1t = jnp.dot(pp_ref[0:9 * Cb, 0:9 * Cin], xim_ref[...],
                      preferred_element_type=jnp.float32)                  # (9*Cb, n_out)
        sc1t = jnp.concatenate([sc1] * 9, axis=0)                          # (9*Cb, 1)
        sh1t = jnp.concatenate([sh1] * 9, axis=0)
        mask = pp_ref[r_mask:r_mask + 9 * Cb, 0:n_out]                     # static tap mask
        h1t = jnp.maximum(y1t * sc1t + sh1t, 0.0) * mask                   # re-zero conv pads

        # ---- stage 2: the whole 3x3 stride-2 conv is ONE matmul with K = 9*Cb -------------
        y2 = jnp.dot(pp_ref[r_w2:r_w2 + Cb, 0:9 * Cb], h1t,
                     preferred_element_type=jnp.float32)                   # (Cb, n_out)
        sc2, sh2 = bn_affine(y2,
                             pp_ref[r_w3:r_w3 + Cb, c_bn12 + 2:c_bn12 + 3],
                             pp_ref[r_w3:r_w3 + Cb, c_bn12 + 3:c_bn12 + 4], inv_out)
        h2 = jnp.maximum(y2 * sc2 + sh2, 0.0)

        # ---- stage 3 + skip 1x1 convs: one block-diagonal matmul -> [y3 ; yskip] ----------
        xsk = xim_ref[4 * Cin:5 * Cin, :]          # center tap == stride-2 sample of x
        y3s = jnp.dot(pp_ref[r_w3:r_w3 + 2 * Cexp, 0:Cb + Cin],
                      jnp.concatenate([h2, xsk], axis=0),
                      preferred_element_type=jnp.float32)                  # (2*Cexp, n_out)
        y3 = y3s[0:Cexp, :]
        ysk = y3s[Cexp:2 * Cexp, :]
        sc3, sh3 = bn_affine(y3,
                             pp_ref[r_w3:r_w3 + Cexp, c_bn3 + 0:c_bn3 + 1],
                             pp_ref[r_w3:r_w3 + Cexp, c_bn3 + 1:c_bn3 + 2], inv_out)
        scs, shs = bn_affine(ysk,
                             pp_ref[r_w3:r_w3 + Cexp, c_bn3 + 2:c_bn3 + 3],
                             pp_ref[r_w3:r_w3 + Cexp, c_bn3 + 3:c_bn3 + 4], inv_out)

        # residual add + final ReLU, stored lane-dense as (Cexp, n_out) = (16, 128)
        o_ref[...] = jnp.maximum(y3 * sc3 + ysk * scs + (sh3 + shs), 0.0)

    return kernel


def resnet_bottleneck_block(x_nchw, params):
    B, Cin, H, W = x_nchw.shape
    Cb = params["w1"].shape[1]
    Cexp = params["w3"].shape[1]
    stride, padding = resolve_stride_padding(Cin, Cexp)
    assert stride == 2 and padding == 1, "only the default stride-2 conv-skip variant"

    Ho = (H + 2 * padding - 3) // stride + 1
    Wo = (W + 2 * padding - 3) // stride + 1
    n_out = B * Ho * Wo
    n_stat = B * H * W
    assert n_out <= 128 and 9 * Cin <= 128 and 9 * Cb <= 128, "toy-size single-tile kernel"

    x = x_nchw.astype(jnp.float32)

    # stride-2 im2col of x (zeros at padding): tap-major rows, output pixels on lanes.
    xim = _im2col_s2(x, Ho, Wo, stride, padding)                           # (9*Cin, n_out)
    # channel-major x for BN1 batch statistics (pixel order irrelevant for sums).
    xcm = jnp.transpose(x, (1, 0, 2, 3)).reshape(Cin, n_stat)              # (Cin, n_stat)
    # tap-validity mask (constant-folded at compile time; re-zeroes h1 at conv padding taps).
    m9 = _im2col_s2(jnp.ones((B, 1, H, W), jnp.float32), Ho, Wo, stride, padding)  # (9, n_out)
    mask36 = jnp.repeat(m9, Cb, axis=0)                                    # (9*Cb, n_out)

    # ---- single packed parameter slab (one DMA instead of eight) -------------------------
    # Conv biases intentionally dropped: training-mode BN cancels them exactly.
    w1t = jnp.transpose(params["w1"]).astype(jnp.float32)                  # (Cb, Cin)
    w1bd = jnp.kron(jnp.eye(9, dtype=jnp.float32), w1t)                    # (9Cb, 9Cin) blkdiag
    w2s = jnp.transpose(params["w2"].reshape(9 * Cb, Cb)).astype(jnp.float32)  # (Cb, 9Cb)
    w3t = jnp.transpose(params["w3"]).astype(jnp.float32)                  # (Cexp, Cb)
    wst = jnp.transpose(params["ws"]).astype(jnp.float32)                  # (Cexp, Cin)

    r_w2 = 9 * Cb                      # rows of w2s
    r_w3 = r_w2 + Cb                   # rows of blockdiag(w3t, wst) and BN vectors
    r_mask = r_w3 + 2 * Cexp           # rows of the tap mask
    n_rows = r_mask + 9 * Cb
    c_bn3 = Cb + Cin                   # columns holding g3/be3/gs/bes
    c_bn12 = c_bn3 + 4                 # columns holding g1/be1/g2/be2
    assert c_bn12 + 4 <= 128

    pp = jnp.zeros((n_rows, 128), jnp.float32)
    pp = pp.at[0:9 * Cb, 0:9 * Cin].set(w1bd)
    pp = pp.at[r_w2:r_w2 + Cb, 0:9 * Cb].set(w2s)
    pp = pp.at[r_w3:r_w3 + Cexp, 0:Cb].set(w3t)
    pp = pp.at[r_w3 + Cexp:r_w3 + 2 * Cexp, Cb:Cb + Cin].set(wst)
    pp = pp.at[r_w3:r_w3 + Cexp, c_bn3 + 0].set(params["g3"])
    pp = pp.at[r_w3:r_w3 + Cexp, c_bn3 + 1].set(params["be3"])
    pp = pp.at[r_w3:r_w3 + Cexp, c_bn3 + 2].set(params["gs"])
    pp = pp.at[r_w3:r_w3 + Cexp, c_bn3 + 3].set(params["bes"])
    pp = pp.at[r_w3:r_w3 + Cb, c_bn12 + 0].set(params["g1"])
    pp = pp.at[r_w3:r_w3 + Cb, c_bn12 + 1].set(params["be1"])
    pp = pp.at[r_w3:r_w3 + Cb, c_bn12 + 2].set(params["g2"])
    pp = pp.at[r_w3:r_w3 + Cb, c_bn12 + 3].set(params["be2"])
    pp = pp.at[r_mask:r_mask + 9 * Cb, 0:n_out].set(mask36)

    kernel = _make_block_kernel(Cin, Cb, Cexp, n_stat, n_out,
                                r_w2, r_w3, r_mask, c_bn3, c_bn12)
    vmem = lambda: pl.BlockSpec(memory_space=pltpu.MemorySpace.VMEM)

    out_cm = pl.pallas_call(
        kernel,
        out_shape=jax.ShapeDtypeStruct((Cexp, n_out), jnp.float32),
        in_specs=[vmem(), vmem(), vmem()],
        out_specs=vmem(),
    )(xim, xcm, pp)

    out = out_cm.reshape(Cexp, B, Ho, Wo)
    return jnp.transpose(out, (1, 0, 2, 3))                                # NCHW


def init_params(key, in_channel, base_channel, expand_scale=4):
    expand_channel = expand_scale * base_channel
    ks = jax.random.split(key, 16)
    n = lambda k, shape, s: (s * jax.random.normal(k, shape)).astype(jnp.float32)
    return {
        # conv weights stored as (kh, kw,) Cin, Cout
        "w1": n(ks[0], (in_channel, base_channel), 0.3),
        "b1": n(ks[1], (base_channel,), 0.1),
        "w2": n(ks[2], (3, 3, base_channel, base_channel), 0.3),
        "b2": n(ks[3], (base_channel,), 0.1),
        "w3": n(ks[4], (base_channel, expand_channel), 0.3),
        "b3": n(ks[5], (expand_channel,), 0.1),
        "ws": n(ks[6], (in_channel, expand_channel), 0.3),
        "bs": n(ks[7], (expand_channel,), 0.1),
        # BatchNorm affine params, perturbed to keep the test non-trivial.
        "g1": 1.0 + n(ks[8], (base_channel,), 0.1),
        "be1": n(ks[9], (base_channel,), 0.1),
        "g2": 1.0 + n(ks[10], (base_channel,), 0.1),
        "be2": n(ks[11], (base_channel,), 0.1),
        "g3": 1.0 + n(ks[12], (expand_channel,), 0.1),
        "be3": n(ks[13], (expand_channel,), 0.1),
        "gs": 1.0 + n(ks[14], (expand_channel,), 0.1),
        "bes": n(ks[15], (expand_channel,), 0.1),
    }


def _reference(x_nchw, p):
    """Pure-JAX reference (lax conv, with biases, two-pass training-mode BN)."""
    x = jnp.transpose(x_nchw, (0, 2, 3, 1)).astype(jnp.float32)
    Cin = x.shape[-1]
    Cb = p["w1"].shape[1]
    Cexp = p["w3"].shape[1]
    stride, padding = resolve_stride_padding(Cin, Cexp)

    def conv(x, w, b, s, pad):
        y = lax.conv_general_dilated(x, w, (s, s), ((pad, pad), (pad, pad)),
                                     dimension_numbers=("NHWC", "HWIO", "NHWC"))
        return y + b.reshape(1, 1, 1, -1)

    def bn(y, g, be):
        m = y.mean(axis=(0, 1, 2), keepdims=True)
        v = jnp.square(y - m).mean(axis=(0, 1, 2), keepdims=True)
        return g.reshape(1, 1, 1, -1) * (y - m) / jnp.sqrt(v + EPS) + be.reshape(1, 1, 1, -1)

    h1 = jax.nn.relu(bn(conv(x, p["w1"].reshape(1, 1, Cin, Cb), p["b1"], 1, 0),
                        p["g1"], p["be1"]))
    h2 = jax.nn.relu(bn(conv(h1, p["w2"], p["b2"], stride, padding), p["g2"], p["be2"]))
    h3 = bn(conv(h2, p["w3"].reshape(1, 1, Cb, Cexp), p["b3"], 1, 0), p["g3"], p["be3"])
    sk = bn(conv(x, p["ws"].reshape(1, 1, Cin, Cexp), p["bs"], stride, 0), p["gs"], p["bes"])
    out = jax.nn.relu(h3 + sk)
    return jnp.transpose(out, (0, 3, 1, 2))


if __name__ == "__main__":
    key = jax.random.PRNGKey(0)
    kx, kp = jax.random.split(key)

    in_channel, base_channel = 4, 4                    # expand_channel = 16
    params = init_params(kp, in_channel, base_channel)
    x = jax.random.normal(kx, (2, in_channel, 16, 16), dtype=jnp.float32)

    fwd = jax.jit(resnet_bottleneck_block)
    out = jax.block_until_ready(fwd(x, params))
    assert out.shape == (2, 16, 8, 8), out.shape

    ref = jax.block_until_ready(jax.jit(_reference)(x, params))
    err = float(jnp.max(jnp.abs(out - ref)))
    if not jnp.allclose(out, ref, atol=2e-4, rtol=2e-4):
        raise AssertionError(f"mismatch vs reference, max abs err = {err}")

    print("KERNEL_OK")
</pallas_src>

<mosaic_0001>
module attributes {stable_mosaic.version = 11 : i64} {
  func.func @kernel(%arg0: memref<36x128xf32, #tpu.memory_space<vmem>>, %arg1: memref<4x512xf32, #tpu.memory_space<vmem>>, %arg2: memref<108x128xf32, #tpu.memory_space<vmem>>, %arg3: memref<16x128xf32, #tpu.memory_space<vmem>>) attributes {dimension_semantics = [], scalar_prefetch = 0 : i64, scratch_operands = 0 : i64, tpu.core_type = #tpu.core_type<tc>} {
    %c0 = arith.constant 0 : index
    %c0_0 = arith.constant 0 : index
    %0 = vector.load %arg2[%c0, %c0_0] : memref<108x128xf32, #tpu.memory_space<vmem>>, vector<4x4xf32>
    %c0_1 = arith.constant 0 : index
    %c0_2 = arith.constant 0 : index
    %1 = vector.load %arg1[%c0_1, %c0_2] : memref<4x512xf32, #tpu.memory_space<vmem>>, vector<4x512xf32>
    %cst = arith.constant dense<0.000000e+00> : vector<4x512xf32>
    %2 = tpu.matmul %0, %1, %cst {dimension_numbers = #tpu.dot_dimension_numbers<[1], [0], [0], [1], [0, 0, 1, 1], [], []>} : vector<4x4xf32>, vector<4x512xf32>, vector<4x512xf32> -> vector<4x512xf32>
    %c40 = arith.constant 40 : index
    %c12 = arith.constant 12 : index
    %3 = vector.load %arg2[%c40, %c12] : memref<108x128xf32, #tpu.memory_space<vmem>>, vector<4x1xf32>
    %c40_3 = arith.constant 40 : index
    %c13 = arith.constant 13 : index
    %4 = vector.load %arg2[%c40_3, %c13] : memref<108x128xf32, #tpu.memory_space<vmem>>, vector<4x1xf32>
    %cst_4 = arith.constant dense<0.000000e+00> : vector<4xf32>
    %5 = vector.multi_reduction <add>, %2, %cst_4 [1] : vector<4x512xf32> to vector<4xf32>
    %6 = vector.shape_cast %5 : vector<4xf32> to vector<4x1xf32>
    %7 = arith.mulf %2, %2 : vector<4x512xf32>
    %cst_5 = arith.constant dense<0.000000e+00> : vector<4xf32>
    %8 = vector.multi_reduction <add>, %7, %cst_5 [1] : vector<4x512xf32> to vector<4xf32>
    %9 = vector.shape_cast %8 : vector<4xf32> to vector<4x1xf32>
    %cst_6 = arith.constant 0.001953125 : f32
    %10 = vector.broadcast %cst_6 : f32 to vector<4x1xf32>
    %11 = arith.mulf %6, %10 : vector<4x1xf32>
    %cst_7 = arith.constant 0.001953125 : f32
    %12 = vector.broadcast %cst_7 : f32 to vector<4x1xf32>
    %13 = arith.mulf %9, %12 : vector<4x1xf32>
    %14 = arith.mulf %11, %11 : vector<4x1xf32>
    %15 = arith.subf %13, %14 : vector<4x1xf32>
    %cst_8 = arith.constant 0.000000e+00 : f32
    %16 = vector.broadcast %cst_8 : f32 to vector<4x1xf32>
    %17 = arith.maximumf %15, %16 : vector<4x1xf32>
    %cst_9 = arith.constant 9.99999974E-6 : f32
    %18 = vector.broadcast %cst_9 : f32 to vector<4x1xf32>
    %19 = arith.addf %17, %18 : vector<4x1xf32>
    %20 = math.rsqrt %19 : vector<4x1xf32>
    %21 = arith.mulf %3, %20 : vector<4x1xf32>
    %22 = arith.mulf %11, %21 : vector<4x1xf32>
    %23 = arith.subf %4, %22 : vector<4x1xf32>
    %c0_10 = arith.constant 0 : index
    %c0_11 = arith.constant 0 : index
    %24 = vector.load %arg2[%c0_10, %c0_11] : memref<108x128xf32, #tpu.memory_space<vmem>>, vector<36x36xf32>
    %c0_12 = arith.constant 0 : index
    %c0_13 = arith.constant 0 : index
    %25 = vector.load %arg0[%c0_12, %c0_13] : memref<36x128xf32, #tpu.memory_space<vmem>>, vector<36x128xf32>
    %cst_14 = arith.constant dense<0.000000e+00> : vector<36x128xf32>
    %26 = tpu.matmul %24, %25, %cst_14 {dimension_numbers = #tpu.dot_dimension_numbers<[1], [0], [0], [1], [0, 0, 1, 1], [], []>} : vector<36x36xf32>, vector<36x128xf32>, vector<36x128xf32> -> vector<36x128xf32>
    %27 = tpu.concatenate %21, %21, %21, %21, %21, %21, %21, %21, %21 in 0 : vector<4x1xf32>, vector<4x1xf32>, vector<4x1xf32>, vector<4x1xf32>, vector<4x1xf32>, vector<4x1xf32>, vector<4x1xf32>, vector<4x1xf32>, vector<4x1xf32> -> vector<36x1xf32>
    %28 = tpu.concatenate %23, %23, %23, %23, %23, %23, %23, %23, %23 in 0 : vector<4x1xf32>, vector<4x1xf32>, vector<4x1xf32>, vector<4x1xf32>, vector<4x1xf32>, vector<4x1xf32>, vector<4x1xf32>, vector<4x1xf32>, vector<4x1xf32> -> vector<36x1xf32>
    %c72 = arith.constant 72 : index
    %c0_15 = arith.constant 0 : index
    %29 = vector.load %arg2[%c72, %c0_15] : memref<108x128xf32, #tpu.memory_space<vmem>>, vector<36x128xf32>
    %30 = vector.broadcast %27 : vector<36x1xf32> to vector<36x128xf32>
    %31 = arith.mulf %26, %30 : vector<36x128xf32>
    %32 = vector.broadcast %28 : vector<36x1xf32> to vector<36x128xf32>
    %33 = arith.addf %31, %32 : vector<36x128xf32>
    %cst_16 = arith.constant 0.000000e+00 : f32
    %34 = vector.broadcast %cst_16 : f32 to vector<36x128xf32>
    %35 = arith.maximumf %33, %34 : vector<36x128xf32>
    %36 = arith.mulf %35, %29 : vector<36x128xf32>
    %c36 = arith.constant 36 : index
    %c0_17 = arith.constant 0 : index
    %37 = vector.load %arg2[%c36, %c0_17] : memref<108x128xf32, #tpu.memory_space<vmem>>, vector<4x36xf32>
    %cst_18 = arith.constant dense<0.000000e+00> : vector<4x128xf32>
    %38 = tpu.matmul %37, %36, %cst_18 {dimension_numbers = #tpu.dot_dimension_numbers<[1], [0], [0], [1], [0, 0, 1, 1], [], []>} : vector<4x36xf32>, vector<36x128xf32>, vector<4x128xf32> -> vector<4x128xf32>
    %c40_19 = arith.constant 40 : index
    %c14 = arith.constant 14 : index
    %39 = vector.load %arg2[%c40_19, %c14] : memref<108x128xf32, #tpu.memory_space<vmem>>, vector<4x1xf32>
    %c40_20 = arith.constant 40 : index
    %c15 = arith.constant 15 : index
    %40 = vector.load %arg2[%c40_20, %c15] : memref<108x128xf32, #tpu.memory_space<vmem>>, vector<4x1xf32>
    %cst_21 = arith.constant dense<0.000000e+00> : vector<4xf32>
    %41 = vector.multi_reduction <add>, %38, %cst_21 [1] : vector<4x128xf32> to vector<4xf32>
    %42 = vector.shape_cast %41 : vector<4xf32> to vector<4x1xf32>
    %43 = arith.mulf %38, %38 : vector<4x128xf32>
    %cst_22 = arith.constant dense<0.000000e+00> : vector<4xf32>
    %44 = vector.multi_reduction <add>, %43, %cst_22 [1] : vector<4x128xf32> to vector<4xf32>
    %45 = vector.shape_cast %44 : vector<4xf32> to vector<4x1xf32>
    %cst_23 = arith.constant 7.812500e-03 : f32
    %46 = vector.broadcast %cst_23 : f32 to vector<4x1xf32>
    %47 = arith.mulf %42, %46 : vector<4x1xf32>
    %cst_24 = arith.constant 7.812500e-03 : f32
    %48 = vector.broadcast %cst_24 : f32 to vector<4x1xf32>
    %49 = arith.mulf %45, %48 : vector<4x1xf32>
    %50 = arith.mulf %47, %47 : vector<4x1xf32>
    %51 = arith.subf %49, %50 : vector<4x1xf32>
    %cst_25 = arith.constant 0.000000e+00 : f32
    %52 = vector.broadcast %cst_25 : f32 to vector<4x1xf32>
    %53 = arith.maximumf %51, %52 : vector<4x1xf32>
    %cst_26 = arith.constant 9.99999974E-6 : f32
    %54 = vector.broadcast %cst_26 : f32 to vector<4x1xf32>
    %55 = arith.addf %53, %54 : vector<4x1xf32>
    %56 = math.rsqrt %55 : vector<4x1xf32>
    %57 = arith.mulf %39, %56 : vector<4x1xf32>
    %58 = arith.mulf %47, %57 : vector<4x1xf32>
    %59 = arith.subf %40, %58 : vector<4x1xf32>
    %60 = vector.broadcast %57 : vector<4x1xf32> to vector<4x128xf32>
    %61 = arith.mulf %38, %60 : vector<4x128xf32>
    %62 = vector.broadcast %59 : vector<4x1xf32> to vector<4x128xf32>
    %63 = arith.addf %61, %62 : vector<4x128xf32>
    %cst_27 = arith.constant 0.000000e+00 : f32
    %64 = vector.broadcast %cst_27 : f32 to vector<4x128xf32>
    %65 = arith.maximumf %63, %64 : vector<4x128xf32>
    %c16 = arith.constant 16 : index
    %c0_28 = arith.constant 0 : index
    %66 = vector.load %arg0[%c16, %c0_28] : memref<36x128xf32, #tpu.memory_space<vmem>>, vector<4x128xf32>
    %c40_29 = arith.constant 40 : index
    %c0_30 = arith.constant 0 : index
    %67 = vector.load %arg2[%c40_29, %c0_30] : memref<108x128xf32, #tpu.memory_space<vmem>>, vector<32x8xf32>
    %68 = tpu.concatenate %65, %66 in 0 : vector<4x128xf32>, vector<4x128xf32> -> vector<8x128xf32>
    %cst_31 = arith.constant dense<0.000000e+00> : vector<32x128xf32>
    %69 = tpu.matmul %67, %68, %cst_31 {dimension_numbers = #tpu.dot_dimension_numbers<[1], [0], [0], [1], [0, 0, 1, 1], [], []>} : vector<32x8xf32>, vector<8x128xf32>, vector<32x128xf32> -> vector<32x128xf32>
    %70 = vector.extract_strided_slice %69 {offsets = [0, 0], sizes = [16, 128], strides = [1, 1]} : vector<32x128xf32> to vector<16x128xf32>
    %71 = vector.extract_strided_slice %69 {offsets = [16, 0], sizes = [16, 128], strides = [1, 1]} : vector<32x128xf32> to vector<16x128xf32>
    %c40_32 = arith.constant 40 : index
    %c8 = arith.constant 8 : index
    %72 = vector.load %arg2[%c40_32, %c8] : memref<108x128xf32, #tpu.memory_space<vmem>>, vector<16x1xf32>
    %c40_33 = arith.constant 40 : index
    %c9 = arith.constant 9 : index
    %73 = vector.load %arg2[%c40_33, %c9] : memref<108x128xf32, #tpu.memory_space<vmem>>, vector<16x1xf32>
    %cst_34 = arith.constant dense<0.000000e+00> : vector<16xf32>
    %74 = vector.multi_reduction <add>, %70, %cst_34 [1] : vector<16x128xf32> to vector<16xf32>
    %75 = vector.shape_cast %74 : vector<16xf32> to vector<16x1xf32>
    %76 = arith.mulf %70, %70 : vector<16x128xf32>
    %cst_35 = arith.constant dense<0.000000e+00> : vector<16xf32>
    %77 = vector.multi_reduction <add>, %76, %cst_35 [1] : vector<16x128xf32> to vector<16xf32>
    %78 = vector.shape_cast %77 : vector<16xf32> to vector<16x1xf32>
    %cst_36 = arith.constant 7.812500e-03 : f32
    %79 = vector.broadcast %cst_36 : f32 to vector<16x1xf32>
    %80 = arith.mulf %75, %79 : vector<16x1xf32>
    %cst_37 = arith.constant 7.812500e-03 : f32
    %81 = vector.broadcast %cst_37 : f32 to vector<16x1xf32>
    %82 = arith.mulf %78, %81 : vector<16x1xf32>
    %83 = arith.mulf %80, %80 : vector<16x1xf32>
    %84 = arith.subf %82, %83 : vector<16x1xf32>
    %cst_38 = arith.constant 0.000000e+00 : f32
    %85 = vector.broadcast %cst_38 : f32 to vector<16x1xf32>
    %86 = arith.maximumf %84, %85 : vector<16x1xf32>
    %cst_39 = arith.constant 9.99999974E-6 : f32
    %87 = vector.broadcast %cst_39 : f32 to vector<16x1xf32>
    %88 = arith.addf %86, %87 : vector<16x1xf32>
    %89 = math.rsqrt %88 : vector<16x1xf32>
    %90 = arith.mulf %72, %89 : vector<16x1xf32>
    %91 = arith.mulf %80, %90 : vector<16x1xf32>
    %92 = arith.subf %73, %91 : vector<16x1xf32>
    %c40_40 = arith.constant 40 : index
    %c10 = arith.constant 10 : index
    %93 = vector.load %arg2[%c40_40, %c10] : memref<108x128xf32, #tpu.memory_space<vmem>>, vector<16x1xf32>
    %c40_41 = arith.constant 40 : index
    %c11 = arith.constant 11 : index
    %94 = vector.load %arg2[%c40_41, %c11] : memref<108x128xf32, #tpu.memory_space<vmem>>, vector<16x1xf32>
    %cst_42 = arith.constant dense<0.000000e+00> : vector<16xf32>
    %95 = vector.multi_reduction <add>, %71, %cst_42 [1] : vector<16x128xf32> to vector<16xf32>
    %96 = vector.shape_cast %95 : vector<16xf32> to vector<16x1xf32>
    %97 = arith.mulf %71, %71 : vector<16x128xf32>
    %cst_43 = arith.constant dense<0.000000e+00> : vector<16xf32>
    %98 = vector.multi_reduction <add>, %97, %cst_43 [1] : vector<16x128xf32> to vector<16xf32>
    %99 = vector.shape_cast %98 : vector<16xf32> to vector<16x1xf32>
    %cst_44 = arith.constant 7.812500e-03 : f32
    %100 = vector.broadcast %cst_44 : f32 to vector<16x1xf32>
    %101 = arith.mulf %96, %100 : vector<16x1xf32>
    %cst_45 = arith.constant 7.812500e-03 : f32
    %102 = vector.broadcast %cst_45 : f32 to vector<16x1xf32>
    %103 = arith.mulf %99, %102 : vector<16x1xf32>
    %104 = arith.mulf %101, %101 : vector<16x1xf32>
    %105 = arith.subf %103, %104 : vector<16x1xf32>
    %cst_46 = arith.constant 0.000000e+00 : f32
    %106 = vector.broadcast %cst_46 : f32 to vector<16x1xf32>
    %107 = arith.maximumf %105, %106 : vector<16x1xf32>
    %cst_47 = arith.constant 9.99999974E-6 : f32
    %108 = vector.broadcast %cst_47 : f32 to vector<16x1xf32>
    %109 = arith.addf %107, %108 : vector<16x1xf32>
    %110 = math.rsqrt %109 : vector<16x1xf32>
    %111 = arith.mulf %93, %110 : vector<16x1xf32>
    %112 = arith.mulf %101, %111 : vector<16x1xf32>
    %113 = arith.subf %94, %112 : vector<16x1xf32>
    %114 = vector.broadcast %90 : vector<16x1xf32> to vector<16x128xf32>
    %115 = arith.mulf %70, %114 : vector<16x128xf32>
    %116 = vector.broadcast %111 : vector<16x1xf32> to vector<16x128xf32>
    %117 = arith.mulf %71, %116 : vector<16x128xf32>
    %118 = arith.addf %115, %117 : vector<16x128xf32>
    %119 = arith.addf %92, %113 : vector<16x1xf32>
    %120 = vector.broadcast %119 : vector<16x1xf32> to vector<16x128xf32>
    %121 = arith.addf %118, %120 : vector<16x128xf32>
    %cst_48 = arith.constant 0.000000e+00 : f32
    %122 = vector.broadcast %cst_48 : f32 to vector<16x128xf32>
    %123 = arith.maximumf %121, %122 : vector<16x128xf32>
    %c0_49 = arith.constant 0 : index
    %c0_50 = arith.constant 0 : index
    %124 = vector.load %arg3[%c0_49, %c0_50] : memref<16x128xf32, #tpu.memory_space<vmem>>, vector<16x128xf32>
    tpu.vector_store %arg3[%c0_49, %c0_50], %123 {strides = array<i32>} : memref<16x128xf32, #tpu.memory_space<vmem>>, vector<16x128xf32>,
    return
  }
}

</mosaic_0001>

<llo_original>
// kernel: resnet_bottleneck_block.1
$region0: #{resnet_bottleneck_block.1}
  #allocation0 [shape = 'u32[]', space=smem, size = 0x4, offset = 0x4, fixed_abs, tag = 'smem constant byte address 0x4 - core index']
  #allocation1 [shape = 'u32[144,128]{1,0:T(1,128)}', space=vmem, size = 0x12000, scoped, tag = 'internal scratch']
  %s0 = inlined_call_operand.vmem [shape: f32[36,128], index: 0, kind: input, shape index: {}]
  %s1 = inlined_call_operand.vmem [shape: f32[4,512], index: 1, kind: input, shape index: {}]
  %s2 = inlined_call_operand.vmem [shape: f32[108,128], index: 2, kind: input, shape index: {}]
  %s3 = inlined_call_operand.vmem [shape: f32[16,128], index: 3, kind: output, shape index: {}]
  %s4 = sld [smem:[#allocation0]]
  $region22: #{resnet_bottleneck_block.1} parent=0
    _
  %s6 = ssub.s32 1, %s4
  %s7 = scalar_select 0, %s6, %s4
  // Predicated region
  $region2: #{resnet_bottleneck_block.1} parent=0 // pred_check
    _
  $region3: #{resnet_bottleneck_block.1} parent=0 // pred_check_branch
    %9 = sbr.rel (0) target = $region5
  $region4: #{resnet_bottleneck_block.1} parent=0 // pred_region
    _
  $region5: #{resnet_bottleneck_block.1} parent=0 // pred_fallthru
    _
  // Predicated region
  $region6: #{resnet_bottleneck_block.1} parent=0 // pred_check
    _
  $region7: #{resnet_bottleneck_block.1} parent=0 // pred_check_branch
    %11 = sbr.rel (0) target = $region9
  $region8: #{resnet_bottleneck_block.1} parent=0 // pred_region
    _
  $region9: #{resnet_bottleneck_block.1} parent=0 // pred_fallthru
    _
  // Predicated region
  $region10: #{resnet_bottleneck_block.1} parent=0 // pred_check
    _
  $region11: #{resnet_bottleneck_block.1} parent=0 // pred_check_branch
    %13 = sbr.rel (0) target = $region13
  $region12: #{resnet_bottleneck_block.1} parent=0 // pred_region
    _
  $region13: #{resnet_bottleneck_block.1} parent=0 // pred_fallthru
    _
  %v14 = vld [vmem:[%s2] sm:$0xf]
  %v15 = vld [vmem:[%s1] sm:$0xff]
  %v16 = vld [vmem:[%s1 + $0x8] sm:$0xff]
  %v19 = vcombine.high %v15, %v15
  %v20 = vcombine.high %v16, %v16
  %vm21 = vcmask 31744
  %v23 = vsel %vm21, %v14, 0
  %vm25 = vcmask 1043456
  %v26 = vsel %vm25, %v15, 0
  %v28 = vsel %vm25, %v19, 0
  %v30 = vsel %vm25, %v16, 0
  %v32 = vsel %vm25, %v20, 0
  %34 = vmatprep.subr.mxu0 %v28
  %35 = vmatpush1.msra.mxu0 %v26
  %36 = vmatprep.subr.mxu0 0.0
  %37 = vmatpush1.msra.mxu0 0.0
  %38 = vmatprep.subr.mxu0 0.0
  %39 = vmatpush1.msra.mxu0 0.0
  %40 = vmatprep.subr.mxu0 0.0
  %41 = vmatpush1.msra.mxu0 0.0
  %42 = vmatprep.subr.mxu0 0.0
  %43 = vmatpush1.msra.mxu0 0.0
  %44 = vmatprep.subr.mxu0 0.0
  %45 = vmatpush1.msra.mxu0 0.0
  %46 = vmatprep.subr.mxu0 0.0
  %47 = vmatpush1.msra.mxu0 0.0
  %48 = vmatprep.subr.mxu0 0.0
  %49 = vmatpush1.msra.mxu0 0.0
  %50 = vmatprep.subr.mxu0 0.0
  %51 = vmatpush1.msra.mxu0 0.0
  %52 = vmatprep.subr.mxu0 0.0
  %53 = vmatpush1.msra.mxu0 0.0
  %54 = vmatprep.subr.mxu0 0.0
  %55 = vmatpush1.msra.mxu0 0.0
  %56 = vmatprep.subr.mxu0 0.0
  %57 = vmatpush1.msra.mxu0 0.0
  %58 = vmatprep.subr.mxu0 0.0
  %59 = vmatpush1.msra.mxu0 0.0
  %60 = vmatprep.subr.mxu0 0.0
  %61 = vmatpush1.msra.mxu0 0.0
  %62 = vmatprep.subr.mxu0 0.0
  %63 = vmatpush1.msra.mxu0 0.0
  %64 = vmatprep.subr.mxu0 0.0
  %65 = vmatpush1.msra.mxu0 0.0
  %66 = vmatprep.subr.mxu0 0.0
  %67 = vmatpush1.msra.mxu0 0.0
  %68 = vmatprep.subr.mxu0 0.0
  %69 = vmatpush1.msra.mxu0 0.0
  %70 = vmatprep.subr.mxu0 0.0
  %71 = vmatpush1.msra.mxu0 0.0
  %72 = vmatprep.subr.mxu0 0.0
  %73 = vmatpush1.msra.mxu0 0.0
  %74 = vmatprep.subr.mxu0 0.0
  %75 = vmatpush1.msra.mxu0 0.0
  %76 = vmatprep.subr.mxu0 0.0
  %77 = vmatpush1.msra.mxu0 0.0
  %78 = vmatprep.subr.mxu0 0.0
  %79 = vmatpush1.msra.mxu0 0.0
  %80 = vmatprep.subr.mxu0 0.0
  %81 = vmatpush1.msra.mxu0 0.0
  %82 = vmatprep.subr.mxu0 0.0
  %83 = vmatpush1.msra.mxu0 0.0
  %84 = vmatprep.subr.mxu0 0.0
  %85 = vmatpush1.msra.mxu0 0.0
  %86 = vmatprep.subr.mxu0 0.0
  %87 = vmatpush1.msra.mxu0 0.0
  %88 = vmatprep.subr.mxu0 0.0
  %89 = vmatpush1.msra.mxu0 0.0
  %90 = vmatprep.subr.mxu0 0.0
  %91 = vmatpush1.msra.mxu0 0.0
  %92 = vmatprep.subr.mxu0 0.0
  %93 = vmatpush1.msra.mxu0 0.0
  %94 = vmatprep.subr.mxu0 0.0
  %95 = vmatpush1.msra.mxu0 0.0
  %96 = vmatprep.subr.mxu0 0.0
  %97 = vmatpush1.msra.mxu0 0.0
  %98 = vmatprep.mubr.f32.mxu0 0.0
  %99 = vmatmul.mubr.f32.gmra.mrb[0].mxu0 %v23
  %v100 = vpop.f32.mrb[0].mxu0
  %v101 = vadd.f32 0.0, %v100
  %v102 = vpop.f32.mrb[0].mxu0
  %v103 = vadd.f32 0.0, %v102
  %104 = vdwg.mxu0
  %105 = vmatprep.subr.mxu0 %v32
  %106 = vmatpush1.msra.mxu0 %v30
  %107 = vmatprep.subr.mxu0 0.0
  %108 = vmatpush1.msra.mxu0 0.0
  %109 = vmatprep.subr.mxu0 0.0
  %110 = vmatpush1.msra.mxu0 0.0
  %111 = vmatprep.subr.mxu0 0.0
  %112 = vmatpush1.msra.mxu0 0.0
  %113 = vmatprep.subr.mxu0 0.0
  %114 = vmatpush1.msra.mxu0 0.0
  %115 = vmatprep.subr.mxu0 0.0
  %116 = vmatpush1.msra.mxu0 0.0
  %117 = vmatprep.subr.mxu0 0.0
  %118 = vmatpush1.msra.mxu0 0.0
  %119 = vmatprep.subr.mxu0 0.0
  %120 = vmatpush1.msra.mxu0 0.0
  %121 = vmatprep.subr.mxu0 0.0
  %122 = vmatpush1.msra.mxu0 0.0
  %123 = vmatprep.subr.mxu0 0.0
  %124 = vmatpush1.msra.mxu0 0.0
  %125 = vmatprep.subr.mxu0 0.0
  %126 = vmatpush1.msra.mxu0 0.0
  %127 = vmatprep.subr.mxu0 0.0
  %128 = vmatpush1.msra.mxu0 0.0
  %129 = vmatprep.subr.mxu0 0.0
  %130 = vmatpush1.msra.mxu0 0.0
  %131 = vmatprep.subr.mxu0 0.0
  %132 = vmatpush1.msra.mxu0 0.0
  %133 = vmatprep.subr.mxu0 0.0
  %134 = vmatpush1.msra.mxu0 0.0
  %135 = vmatprep.subr.mxu0 0.0
  %136 = vmatpush1.msra.mxu0 0.0
  %137 = vmatprep.subr.mxu0 0.0
  %138 = vmatpush1.msra.mxu0 0.0
  %139 = vmatprep.subr.mxu0 0.0
  %140 = vmatpush1.msra.mxu0 0.0
  %141 = vmatprep.subr.mxu0 0.0
  %142 = vmatpush1.msra.mxu0 0.0
  %143 = vmatprep.subr.mxu0 0.0
  %144 = vmatpush1.msra.mxu0 0.0
  %145 = vmatprep.subr.mxu0 0.0
  %146 = vmatpush1.msra.mxu0 0.0
  %147 = vmatprep.subr.mxu0 0.0
  %148 = vmatpush1.msra.mxu0 0.0
  %149 = vmatprep.subr.mxu0 0.0
  %150 = vmatpush1.msra.mxu0 0.0
  %151 = vmatprep.subr.mxu0 0.0
  %152 = vmatpush1.msra.mxu0 0.0
  %153 = vmatprep.subr.mxu0 0.0
  %154 = vmatpush1.msra.mxu0 0.0
  %155 = vmatprep.subr.mxu0 0.0
  %156 = vmatpush1.msra.mxu0 0.0
  %157 = vmatprep.subr.mxu0 0.0
  %158 = vmatpush1.msra.mxu0 0.0
  %159 = vmatprep.subr.mxu0 0.0
  %160 = vmatpush1.msra.mxu0 0.0
  %161 = vmatprep.subr.mxu0 0.0
  %162 = vmatpush1.msra.mxu0 0.0
  %163 = vmatprep.subr.mxu0 0.0
  %164 = vmatpush1.msra.mxu0 0.0
  %165 = vmatprep.subr.mxu0 0.0
  %166 = vmatpush1.msra.mxu0 0.0
  %167 = vmatprep.subr.mxu0 0.0
  %168 = vmatpush1.msra.mxu0 0.0
  %169 = vmatprep.mubr.f32.mxu0 0.0
  %170 = vmatmul.mubr.f32.gmra.mrb[0].mxu0 %v23
  %v171 = vpop.f32.mrb[0].mxu0
  %v172 = vadd.f32 0.0, %v171
  %v173 = vpop.f32.mrb[0].mxu0
  %v174 = vadd.f32 0.0, %v173
  %175 = vdwg.mxu0
  %v176 = vld [vmem:[%s2 + $0x28] sm:$0xf]
  %v177 = vsel %vm25, %v101, 0.0
  %v178 = vsel %vm25, %v103, 0.0
  %v179 = vadd.f32 %v177, %v178
  %v180 = vsel %vm25, %v172, 0.0
  %v181 = vadd.f32 %v179, %v180
  %v182 = vsel %vm25, %v174, 0.0
  %v183 = vadd.f32 %v181, %v182
  %184 = vadd.xlane.f32.xlu0 %v183
  %v185 = vpop.xlane.xlu0 %184
  %v186 = vmul.f32 %v101, %v101
  %v187 = vmul.f32 %v103, %v103
  %v188 = vmul.f32 %v172, %v172
  %v189 = vmul.f32 %v174, %v174
  %v190 = vsel %vm25, %v186, 0.0
  %v191 = vsel %vm25, %v187, 0.0
  %v192 = vadd.f32 %v190, %v191
  %v193 = vsel %vm25, %v188, 0.0
  %v194 = vadd.f32 %v192, %v193
  %v195 = vsel %vm25, %v189, 0.0
  %v196 = vadd.f32 %v194, %v195
  %197 = vadd.xlane.f32.xlu0 %v196
  %v198 = vpop.xlane.xlu0 %197
  %v199 = vmul.f32 %v185, 0.001953125
  %v200 = vmul.f32 %v198, 0.001953125
  %v201 = vmul.f32 %v199, %v199
  %v202 = vsub.f32 %v200, %v201
  %v203 = vmax.f32 %v202, 0.0
  %v204 = vadd.f32 %v203, 1e-05
  %v205 = vrsqrt.pop %v204
  %v206 = vmul.f32 %v176, %v205
  %v207 = vmul.f32 %v199, %v206
  %209 = vrot.lane.b32.xlu0 %v207, 1
  %v210 = vpop.permute.xlu0 %209
  %v212 = vsub.f32 %v176, %v210
  %v213 = vld [vmem:[%s2] sm:$0xff]
  %v214 = vld [vmem:[%s2 + $0x8] sm:$0xff]
  %v215 = vld [vmem:[%s2 + $0x10] sm:$0xff]
  %v216 = vld [vmem:[%s2 + $0x18] sm:$0xff]
  %v217 = vld [vmem:[%s2 + $0x20] sm:$0xf]
  %v218 = vld [vmem:[%s0] sm:$0xff]
  %v219 = vld [vmem:[%s0 + $0x8] sm:$0xff]
  %v220 = vld [vmem:[%s0 + $0x10] sm:$0xff]
  %v221 = vld [vmem:[%s0 + $0x18] sm:$0xff]
  %v222 = vld [vmem:[%s0 + $0x20] sm:$0xf]
  %vm223 = vcmask 293888
  %v225 = vsel %vm223, %v213, 0
  %v228 = vsel %vm223, %v214, 0
  %v231 = vsel %vm223, %v215, 0
  %v234 = vsel %vm223, %v216, 0
  %v237 = vsel %vm223, %v217, 0
  %v240 = vsel %vm25, %v222, 0
  %242 = vmatprep.subr.mxu0 0.0
  %243 = vmatpush1.msra.mxu0 %v218
  %244 = vmatprep.subr.mxu0 0.0
  %245 = vmatpush1.msra.mxu0 %v219
  %246 = vmatprep.subr.mxu0 0.0
  %247 = vmatpush1.msra.mxu0 %v220
  %248 = vmatprep.subr.mxu0 0.0
  %249 = vmatpush1.msra.mxu0 %v221
  %250 = vmatprep.subr.mxu0 0.0
  %251 = vmatpush1.msra.mxu0 %v240
  %252 = vmatprep.subr.mxu0 0.0
  %253 = vmatpush1.msra.mxu0 0.0
  %254 = vmatprep.subr.mxu0 0.0
  %255 = vmatpush1.msra.mxu0 0.0
  %256 = vmatprep.subr.mxu0 0.0
  %257 = vmatpush1.msra.mxu0 0.0
  %258 = vmatprep.subr.mxu0 0.0
  %259 = vmatpush1.msra.mxu0 0.0
  %260 = vmatprep.subr.mxu0 0.0
  %261 = vmatpush1.msra.mxu0 0.0
  %262 = vmatprep.subr.mxu0 0.0
  %263 = vmatpush1.msra.mxu0 0.0
  %264 = vmatprep.subr.mxu0 0.0
  %265 = vmatpush1.msra.mxu0 0.0
  %266 = vmatprep.subr.mxu0 0.0
  %267 = vmatpush1.msra.mxu0 0.0
  %268 = vmatprep.subr.mxu0 0.0
  %269 = vmatpush1.msra.mxu0 0.0
  %270 = vmatprep.subr.mxu0 0.0
  %271 = vmatpush1.msra.mxu0 0.0
  %272 = vmatprep.subr.mxu0 0.0
  %273 = vmatpush1.msra.mxu0 0.0
  %274 = vmatprep.subr.mxu0 0.0
  %275 = vmatpush1.msra.mxu0 0.0
  %276 = vmatprep.subr.mxu0 0.0
  %277 = vmatpush1.msra.mxu0 0.0
  %278 = vmatprep.subr.mxu0 0.0
  %279 = vmatpush1.msra.mxu0 0.0
  %280 = vmatprep.subr.mxu0 0.0
  %281 = vmatpush1.msra.mxu0 0.0
  %282 = vmatprep.subr.mxu0 0.0
  %283 = vmatpush1.msra.mxu0 0.0
  %284 = vmatprep.subr.mxu0 0.0
  %285 = vmatpush1.msra.mxu0 0.0
  %286 = vmatprep.subr.mxu0 0.0
  %287 = vmatpush1.msra.mxu0 0.0
  %288 = vmatprep.subr.mxu0 0.0
  %289 = vmatpush1.msra.mxu0 0.0
  %290 = vmatprep.subr.mxu0 0.0
  %291 = vmatpush1.msra.mxu0 0.0
  %292 = vmatprep.subr.mxu0 0.0
  %293 = vmatpush1.msra.mxu0 0.0
  %294 = vmatprep.subr.mxu0 0.0
  %295 = vmatpush1.msra.mxu0 0.0
  %296 = vmatprep.subr.mxu0 0.0
  %297 = vmatpush1.msra.mxu0 0.0
  %298 = vmatprep.subr.mxu0 0.0
  %299 = vmatpush1.msra.mxu0 0.0
  %300 = vmatprep.subr.mxu0 0.0
  %301 = vmatpush1.msra.mxu0 0.0
  %302 = vmatprep.subr.mxu0 0.0
  %303 = vmatpush1.msra.mxu0 0.0
  %304 = vmatprep.subr.mxu0 0.0
  %305 = vmatpush1.msra.mxu0 0.0
  %306 = vmatprep.mubr.f32.mxu0 0.0
  %307 = vmatmul.mubr.f32.gmra.mrb[0].mxu0 %v225
  %v308 = vpop.f32.mrb[0].mxu0
  %v309 = vadd.f32 0.0, %v308
  %v310 = vpop.f32.mrb[0].mxu0
  %311 = vmatprep.mubr.f32.mxu0 0.0
  %312 = vmatmul.mubr.f32.gmra.mrb[0].mxu0 %v228
  %v313 = vpop.f32.mrb[0].mxu0
  %v314 = vadd.f32 0.0, %v313
  %v315 = vpop.f32.mrb[0].mxu0
  %316 = vmatprep.mubr.f32.mxu0 0.0
  %317 = vmatmul.mubr.f32.gmra.mrb[0].mxu0 %v231
  %v318 = vpop.f32.mrb[0].mxu0
  %v319 = vadd.f32 0.0, %v318
  %v320 = vpop.f32.mrb[0].mxu0
  %321 = vmatprep.mubr.f32.mxu0 0.0
  %322 = vmatmul.mubr.f32.gmra.mrb[0].mxu0 %v234
  %v323 = vpop.f32.mrb[0].mxu0
  %v324 = vadd.f32 0.0, %v323
  %v325 = vpop.f32.mrb[0].mxu0
  %326 = vmatprep.mubr.f32.mxu0 0.0
  %327 = vmatmul.mubr.f32.gmra.mrb[0].mxu0 %v237
  %v328 = vpop.f32.mrb[0].mxu0
  %v329 = vadd.f32 0.0, %v328
  %v330 = vpop.f32.mrb[0].mxu0
  %331 = vdwg.mxu0
  %v333 = vrot.slane %v206, 4
  %v335 = vsel %vm25, %v206, %v333
  %v337 = vrot.slane %v212, 4
  %v339 = vsel %vm25, %v212, %v337
  %v340 = vld [vmem:[%s2 + $0x48] sm:$0xff]
  %v341 = vld [vmem:[%s2 + $0x50] sm:$0xff]
  %v342 = vld [vmem:[%s2 + $0x58] sm:$0xff]
  %v343 = vld [vmem:[%s2 + $0x60] sm:$0xff]
  %v344 = vld [vmem:[%s2 + $0x68] sm:$0xf]
  %346 = vset.pattern.permute.xlu0 12
  %347 = vperm.xlu0 %346, %v335
  %v348 = vpop.permute.xlu0 %347
  %350 = vset.pattern.permute.xlu0 12
  %351 = vperm.xlu0 %350, %v206
  %v352 = vpop.permute.xlu0 %351
  %v354 = vmul.f32 %v309, %v348
  %v355 = vmul.f32 %v314, %v348
  %v356 = vmul.f32 %v319, %v348
  %v357 = vmul.f32 %v324, %v348
  %v358 = vmul.f32 %v329, %v352
  %360 = vset.pattern.permute.xlu0 13
  %361 = vperm.xlu0 %360, %v339
  %v362 = vpop.permute.xlu0 %361
  %364 = vset.pattern.permute.xlu0 13
  %365 = vperm.xlu0 %364, %v212
  %v366 = vpop.permute.xlu0 %365
  %v368 = vadd.f32 %v354, %v362
  %v369 = vadd.f32 %v355, %v362
  %v370 = vadd.f32 %v356, %v362
  %v371 = vadd.f32 %v357, %v362
  %v372 = vadd.f32 %v358, %v366
  %v373 = vmax.f32 %v368, 0.0
  %v374 = vmax.f32 %v369, 0.0
  %v375 = vmax.f32 %v370, 0.0
  %v376 = vmax.f32 %v371, 0.0
  %v377 = vmax.f32 %v372, 0.0
  %v378 = vmul.f32 %v373, %v340
  %v379 = vmul.f32 %v374, %v341
  %v380 = vmul.f32 %v375, %v342
  %v381 = vmul.f32 %v376, %v343
  %v382 = vmul.f32 %v377, %v344
  %v383 = vld [vmem:[%s2 + $0x24] sm:$0xf]
  %v385 = vsel %vm223, %v383, 0
  %v388 = vsel %vm25, %v382, 0
  %390 = vmatprep.subr.mxu0 0.0
  %391 = vmatpush1.msra.mxu0 %v378
  %392 = vmatprep.subr.mxu0 0.0
  %393 = vmatpush1.msra.mxu0 %v379
  %394 = vmatprep.subr.mxu0 0.0
  %395 = vmatpush1.msra.mxu0 %v380
  %396 = vmatprep.subr.mxu0 0.0
  %397 = vmatpush1.msra.mxu0 %v381
  %398 = vmatprep.subr.mxu0 0.0
  %399 = vmatpush1.msra.mxu0 %v388
  %400 = vmatprep.subr.mxu0 0.0
  %401 = vmatpush1.msra.mxu0 0.0
  %402 = vmatprep.subr.mxu0 0.0
  %403 = vmatpush1.msra.mxu0 0.0
  %404 = vmatprep.subr.mxu0 0.0
  %405 = vmatpush1.msra.mxu0 0.0
  %406 = vmatprep.subr.mxu0 0.0
  %407 = vmatpush1.msra.mxu0 0.0
  %408 = vmatprep.subr.mxu0 0.0
  %409 = vmatpush1.msra.mxu0 0.0
  %410 = vmatprep.subr.mxu0 0.0
  %411 = vmatpush1.msra.mxu0 0.0
  %412 = vmatprep.subr.mxu0 0.0
  %413 = vmatpush1.msra.mxu0 0.0
  %414 = vmatprep.subr.mxu0 0.0
  %415 = vmatpush1.msra.mxu0 0.0
  %416 = vmatprep.subr.mxu0 0.0
  %417 = vmatpush1.msra.mxu0 0.0
  %418 = vmatprep.subr.mxu0 0.0
  %419 = vmatpush1.msra.mxu0 0.0
  %420 = vmatprep.subr.mxu0 0.0
  %421 = vmatpush1.msra.mxu0 0.0
  %422 = vmatprep.subr.mxu0 0.0
  %423 = vmatpush1.msra.mxu0 0.0
  %424 = vmatprep.subr.mxu0 0.0
  %425 = vmatpush1.msra.mxu0 0.0
  %426 = vmatprep.subr.mxu0 0.0
  %427 = vmatpush1.msra.mxu0 0.0
  %428 = vmatprep.subr.mxu0 0.0
  %429 = vmatpush1.msra.mxu0 0.0
  %430 = vmatprep.subr.mxu0 0.0
  %431 = vmatpush1.msra.mxu0 0.0
  %432 = vmatprep.subr.mxu0 0.0
  %433 = vmatpush1.msra.mxu0 0.0
  %434 = vmatprep.subr.mxu0 0.0
  %435 = vmatpush1.msra.mxu0 0.0
  %436 = vmatprep.subr.mxu0 0.0
  %437 = vmatpush1.msra.mxu0 0.0
  %438 = vmatprep.subr.mxu0 0.0
  %439 = vmatpush1.msra.mxu0 0.0
  %440 = vmatprep.subr.mxu0 0.0
  %441 = vmatpush1.msra.mxu0 0.0
  %442 = vmatprep.subr.mxu0 0.0
  %443 = vmatpush1.msra.mxu0 0.0
  %444 = vmatprep.subr.mxu0 0.0
  %445 = vmatpush1.msra.mxu0 0.0
  %446 = vmatprep.subr.mxu0 0.0
  %447 = vmatpush1.msra.mxu0 0.0
  %448 = vmatprep.subr.mxu0 0.0
  %449 = vmatpush1.msra.mxu0 0.0
  %450 = vmatprep.subr.mxu0 0.0
  %451 = vmatpush1.msra.mxu0 0.0
  %452 = vmatprep.subr.mxu0 0.0
  %453 = vmatpush1.msra.mxu0 0.0
  %454 = vmatprep.mubr.f32.mxu0 0.0
  %455 = vmatmul.mubr.f32.gmra.mrb[0].mxu0 %v385
  %v456 = vpop.f32.mrb[0].mxu0
  %v457 = vadd.f32 0.0, %v456
  %v458 = vpop.f32.mrb[0].mxu0
  %459 = vdwg.mxu0
  %v460 = vsel %vm25, %v457, 0.0
  %461 = vadd.xlane.f32.xlu0 %v460
  %v462 = vpop.xlane.xlu0 %461
  %v463 = vmul.f32 %v457, %v457
  %v464 = vsel %vm25, %v463, 0.0
  %465 = vadd.xlane.f32.xlu0 %v464
  %v466 = vpop.xlane.xlu0 %465
  %v467 = vmul.f32 %v462, 0.0078125
  %v468 = vmul.f32 %v466, 0.0078125
  %v469 = vmul.f32 %v467, %v467
  %v470 = vsub.f32 %v468, %v469
  %v471 = vmax.f32 %v470, 0.0
  %v472 = vadd.f32 %v471, 1e-05
  %v473 = vrsqrt.pop %v472
  %v474 = vmul.f32 %v176, %v473
  %v475 = vmul.f32 %v467, %v474
  %477 = vrot.lane.b32.xlu0 %v475, 1
  %v478 = vpop.permute.xlu0 %477
  %v480 = vsub.f32 %v176, %v478
  %482 = vset.pattern.permute.xlu0 14
  %483 = vperm.xlu0 %482, %v474
  %v484 = vpop.permute.xlu0 %483
  %v486 = vmul.f32 %v457, %v484
  %488 = vset.pattern.permute.xlu0 15
  %489 = vperm.xlu0 %488, %v480
  %v490 = vpop.permute.xlu0 %489
  %v492 = vadd.f32 %v486, %v490
  %v493 = vmax.f32 %v492, 0.0
  %v494 = vld [vmem:[%s0 + $0x10] sm:$0xf]
  %v495 = vld [vmem:[%s2 + $0x28] sm:$0xff]
  %v496 = vld [vmem:[%s2 + $0x30] sm:$0xff]
  %v497 = vld [vmem:[%s2 + $0x38] sm:$0xff]
  %v498 = vld [vmem:[%s2 + $0x40] sm:$0xff]
  %v500 = vrot.slane %v494, 4
  %v502 = vsel %vm25, %v493, %v500
  %vm503 = vcmask 64512
  %v505 = vsel %vm503, %v495, 0
  %v508 = vsel %vm503, %v496, 0
  %v511 = vsel %vm503, %v497, 0
  %v514 = vsel %vm503, %v498, 0
  %516 = vmatprep.subr.mxu0 0.0
  %517 = vmatpush1.msra.mxu0 %v502
  %518 = vmatprep.subr.mxu0 0.0
  %519 = vmatpush1.msra.mxu0 0.0
  %520 = vmatprep.subr.mxu0 0.0
  %521 = vmatpush1.msra.mxu0 0.0
  %522 = vmatprep.subr.mxu0 0.0
  %523 = vmatpush1.msra.mxu0 0.0
  %524 = vmatprep.subr.mxu0 0.0
  %525 = vmatpush1.msra.mxu0 0.0
  %526 = vmatprep.subr.mxu0 0.0
  %527 = vmatpush1.msra.mxu0 0.0
  %528 = vmatprep.subr.mxu0 0.0
  %529 = vmatpush1.msra.mxu0 0.0
  %530 = vmatprep.subr.mxu0 0.0
  %531 = vmatpush1.msra.mxu0 0.0
  %532 = vmatprep.subr.mxu0 0.0
  %533 = vmatpush1.msra.mxu0 0.0
  %534 = vmatprep.subr.mxu0 0.0
  %535 = vmatpush1.msra.mxu0 0.0
  %536 = vmatprep.subr.mxu0 0.0
  %537 = vmatpush1.msra.mxu0 0.0
  %538 = vmatprep.subr.mxu0 0.0
  %539 = vmatpush1.msra.mxu0 0.0
  %540 = vmatprep.subr.mxu0 0.0
  %541 = vmatpush1.msra.mxu0 0.0
  %542 = vmatprep.subr.mxu0 0.0
  %543 = vmatpush1.msra.mxu0 0.0
  %544 = vmatprep.subr.mxu0 0.0
  %545 = vmatpush1.msra.mxu0 0.0
  %546 = vmatprep.subr.mxu0 0.0
  %547 = vmatpush1.msra.mxu0 0.0
  %548 = vmatprep.subr.mxu0 0.0
  %549 = vmatpush1.msra.mxu0 0.0
  %550 = vmatprep.subr.mxu0 0.0
  %551 = vmatpush1.msra.mxu0 0.0
  %552 = vmatprep.subr.mxu0 0.0
  %553 = vmatpush1.msra.mxu0 0.0
  %554 = vmatprep.subr.mxu0 0.0
  %555 = vmatpush1.msra.mxu0 0.0
  %556 = vmatprep.subr.mxu0 0.0
  %557 = vmatpush1.msra.mxu0 0.0
  %558 = vmatprep.subr.mxu0 0.0
  %559 = vmatpush1.msra.mxu0 0.0
  %560 = vmatprep.subr.mxu0 0.0
  %561 = vmatpush1.msra.mxu0 0.0
  %562 = vmatprep.subr.mxu0 0.0
  %563 = vmatpush1.msra.mxu0 0.0
  %564 = vmatprep.subr.mxu0 0.0
  %565 = vmatpush1.msra.mxu0 0.0
  %566 = vmatprep.subr.mxu0 0.0
  %567 = vmatpush1.msra.mxu0 0.0
  %568 = vmatprep.subr.mxu0 0.0
  %569 = vmatpush1.msra.mxu0 0.0
  %570 = vmatprep.subr.mxu0 0.0
  %571 = vmatpush1.msra.mxu0 0.0
  %572 = vmatprep.subr.mxu0 0.0
  %573 = vmatpush1.msra.mxu0 0.0
  %574 = vmatprep.subr.mxu0 0.0
  %575 = vmatpush1.msra.mxu0 0.0
  %576 = vmatprep.subr.mxu0 0.0
  %577 = vmatpush1.msra.mxu0 0.0
  %578 = vmatprep.subr.mxu0 0.0
  %579 = vmatpush1.msra.mxu0 0.0
  %580 = vmatprep.mubr.f32.mxu0 0.0
  %581 = vmatmul.mubr.f32.gmra.mrb[0].mxu0 %v505
  %v582 = vpop.f32.mrb[0].mxu0
  %v583 = vadd.f32 0.0, %v582
  %v584 = vpop.f32.mrb[0].mxu0
  %585 = vmatprep.mubr.f32.mxu0 0.0
  %586 = vmatmul.mubr.f32.gmra.mrb[0].mxu0 %v508
  %v587 = vpop.f32.mrb[0].mxu0
  %v588 = vadd.f32 0.0, %v587
  %v589 = vpop.f32.mrb[0].mxu0
  %590 = vmatprep.mubr.f32.mxu0 0.0
  %591 = vmatmul.mubr.f32.gmra.mrb[0].mxu0 %v511
  %v592 = vpop.f32.mrb[0].mxu0
  %v593 = vadd.f32 0.0, %v592
  %v594 = vpop.f32.mrb[0].mxu0
  %595 = vmatprep.mubr.f32.mxu0 0.0
  %596 = vmatmul.mubr.f32.gmra.mrb[0].mxu0 %v514
  %v597 = vpop.f32.mrb[0].mxu0
  %v598 = vadd.f32 0.0, %v597
  %v599 = vpop.f32.mrb[0].mxu0
  %600 = vdwg.mxu0
  %v601 = vld [vmem:[%s2 + $0x28] sm:$0xff]
  %v602 = vld [vmem:[%s2 + $0x30] sm:$0xff]
  %603 = vadd.xlane.f32.xlu0 %v583
  %v604 = vpop.xlane.xlu0 %603
  %605 = vadd.xlane.f32.xlu0 %v588
  %v606 = vpop.xlane.xlu0 %605
  %v607 = vmul.f32 %v583, %v583
  %v608 = vmul.f32 %v588, %v588
  %609 = vadd.xlane.f32.xlu0 %v607
  %v610 = vpop.xlane.xlu0 %609
  %611 = vadd.xlane.f32.xlu0 %v608
  %v612 = vpop.xlane.xlu0 %611
  %v613 = vmul.f32 %v604, 0.0078125
  %v614 = vmul.f32 %v606, 0.0078125
  %v615 = vmul.f32 %v610, 0.0078125
  %v616 = vmul.f32 %v612, 0.0078125
  %v617 = vmul.f32 %v613, %v613
  %v618 = vmul.f32 %v614, %v614
  %v619 = vsub.f32 %v615, %v617
  %v620 = vsub.f32 %v616, %v618
  %v621 = vmax.f32 %v619, 0.0
  %v622 = vmax.f32 %v620, 0.0
  %v623 = vadd.f32 %v621, 1e-05
  %v624 = vadd.f32 %v622, 1e-05
  %v625 = vrsqrt.pop %v623
  %v626 = vrsqrt.pop %v624
  %v627 = vmul.f32 %v601, %v625
  %v628 = vmul.f32 %v602, %v626
  %v629 = vmul.f32 %v613, %v627
  %v630 = vmul.f32 %v614, %v628
  %633 = vrot.lane.b32.xlu0 %v629, 1
  %v634 = vpop.permute.xlu0 %633
  %635 = vrot.lane.b32.xlu0 %v630, 1
  %v636 = vpop.permute.xlu0 %635
  %v639 = vsub.f32 %v601, %v634
  %v640 = vsub.f32 %v602, %v636
  %641 = vadd.xlane.f32.xlu0 %v593
  %v642 = vpop.xlane.xlu0 %641
  %643 = vadd.xlane.f32.xlu0 %v598
  %v644 = vpop.xlane.xlu0 %643
  %v645 = vmul.f32 %v593, %v593
  %v646 = vmul.f32 %v598, %v598
  %647 = vadd.xlane.f32.xlu0 %v645
  %v648 = vpop.xlane.xlu0 %647
  %649 = vadd.xlane.f32.xlu0 %v646
  %v650 = vpop.xlane.xlu0 %649
  %v651 = vmul.f32 %v642, 0.0078125
  %v652 = vmul.f32 %v644, 0.0078125
  %v653 = vmul.f32 %v648, 0.0078125
  %v654 = vmul.f32 %v650, 0.0078125
  %v655 = vmul.f32 %v651, %v651
  %v656 = vmul.f32 %v652, %v652
  %v657 = vsub.f32 %v653, %v655
  %v658 = vsub.f32 %v654, %v656
  %v659 = vmax.f32 %v657, 0.0
  %v660 = vmax.f32 %v658, 0.0
  %v661 = vadd.f32 %v659, 1e-05
  %v662 = vadd.f32 %v660, 1e-05
  %v663 = vrsqrt.pop %v661
  %v664 = vrsqrt.pop %v662
  %v665 = vmul.f32 %v601, %v663
  %v666 = vmul.f32 %v602, %v664
  %v667 = vmul.f32 %v651, %v665
  %v668 = vmul.f32 %v652, %v666
  %671 = vrot.lane.b32.xlu0 %v667, 1
  %v672 = vpop.permute.xlu0 %671
  %673 = vrot.lane.b32.xlu0 %v668, 1
  %v674 = vpop.permute.xlu0 %673
  %v677 = vsub.f32 %v601, %v672
  %v678 = vsub.f32 %v602, %v674
  %680 = vset.pattern.permute.xlu0 8
  %681 = vperm.xlu0 %680, %v627
  %v682 = vpop.permute.xlu0 %681
  %685 = vset.pattern.permute.xlu0 8
  %686 = vperm.xlu0 %685, %v628
  %v687 = vpop.permute.xlu0 %686
  %v689 = vmul.f32 %v583, %v682
  %v690 = vmul.f32 %v588, %v687
  %692 = vset.pattern.permute.xlu0 10
  %693 = vperm.xlu0 %692, %v665
  %v694 = vpop.permute.xlu0 %693
  %697 = vset.pattern.permute.xlu0 10
  %698 = vperm.xlu0 %697, %v666
  %v699 = vpop.permute.xlu0 %698
  %v701 = vmul.f32 %v593, %v694
  %v702 = vmul.f32 %v598, %v699
  %v703 = vadd.f32 %v689, %v701
  %v704 = vadd.f32 %v690, %v702
  %707 = vrot.lane.b32.xlu0 %v677, 126
  %v708 = vpop.permute.xlu0 %707
  %709 = vrot.lane.b32.xlu0 %v678, 126
  %v710 = vpop.permute.xlu0 %709
  %v713 = vadd.f32 %v639, %v708
  %v714 = vadd.f32 %v640, %v710
  %716 = vset.pattern.permute.xlu0 9
  %717 = vperm.xlu0 %716, %v713
  %v718 = vpop.permute.xlu0 %717
  %721 = vset.pattern.permute.xlu0 9
  %722 = vperm.xlu0 %721, %v714
  %v723 = vpop.permute.xlu0 %722
  %v725 = vadd.f32 %v703, %v718
  %v726 = vadd.f32 %v704, %v723
  %v727 = vmax.f32 %v725, 0.0
  %v728 = vmax.f32 %v726, 0.0
  %729 = vst [vmem:[%s3] sm:$0xff] %v727
  %730 = vst [vmem:[%s3 + $0x8] sm:$0xff] %v728
  // Predicated region
  $region14: #{resnet_bottleneck_block.1} parent=0 // pred_check
    _
  $region15: #{resnet_bottleneck_block.1} parent=0 // pred_check_branch
    %732 = sbr.rel (0) target = $region17
  $region16: #{resnet_bottleneck_block.1} parent=0 // pred_region
    _
  $region17: #{resnet_bottleneck_block.1} parent=0 // pred_fallthru
    _
  // Predicated region
  $region18: #{resnet_bottleneck_block.1} parent=0 // pred_check
    _
  $region19: #{resnet_bottleneck_block.1} parent=0 // pred_check_branch
    %734 = sbr.rel (0) target = $region21
  $region20: #{resnet_bottleneck_block.1} parent=0 // pred_region
    _
  $region21: #{resnet_bottleneck_block.1} parent=0 // pred_fallthru
    _

</llo_original>
